<compile_context>
chip_gen: v5e
topology: v5e:2x2
jax: 0.10.0
libtpu: 0.0.40
codegen_flags: <defaults>
</compile_context>

<pallas_src>
import jax
import jax.numpy as jnp
from jax.experimental import pallas as pl
from jax.experimental.pallas import tpu as pltpu


def _chomp_kernel(x_ref, o_ref):
    # x_ref: (TR, L) row-chunk of the flattened input, full length.
    # o_ref: (TR, L_out) row-chunk of the flattened output.
    out_len = o_ref.shape[-1]
    # Hot path: a static windowed copy done entirely in VMEM.
    o_ref[...] = x_ref[:, :out_len]


def _cdiv(a: int, b: int) -> int:
    return -(-a // b)


def _round_up(a: int, b: int) -> int:
    return _cdiv(a, b) * b


def chomp1d(x: jax.Array, chomp_size: int) -> jax.Array:
    """Pallas implementation of Chomp1d.forward for NCL inputs."""
    assert x.ndim == 3, "expected (batch, channels, length)"
    B, C, L = x.shape
    # chomp_size == 0 in PyTorch (`x[:, :, :-0]`) yields an empty slice; we
    # reject that degenerate case explicitly.
    assert 0 < chomp_size < L, "chomp_size must be in (0, L)"
    L_out = L - chomp_size

    # Flatten batch x channels into one row axis (free for contiguous NCL).
    R = B * C
    x2 = x.reshape(R, L)

    itemsize = jnp.dtype(x.dtype).itemsize
    # Sublane packing: 8 rows per vreg for 4-byte, 16 for 2-byte, 32 for 1-byte.
    sub = max(8, 32 // itemsize)

    # Target ~2 MiB of output per tile; 2 buffers x (in tile + out tile) stays
    # well under the scoped VMEM budget on every TPU generation.
    target_out_bytes = 2 * 1024 * 1024
    tr = max(1, target_out_bytes // max(1, L_out * itemsize))
    tr = max(sub, (tr // sub) * sub)              # multiple of sublane packing
    tr = min(tr, _round_up(R, sub))               # never bigger than the array

    # Megacore (v7x) balance: if the whole problem fits in one tile but there
    # are enough rows, split into (at least) two parallel grid steps.
    if _cdiv(R, tr) == 1 and R > sub:
        tr = _round_up(_cdiv(R, 2), sub)

    grid = (_cdiv(R, tr),)  # Pallas masks the ragged last row-chunk for us.

    out2 = pl.pallas_call(
        _chomp_kernel,
        out_shape=jax.ShapeDtypeStruct((R, L_out), x.dtype),
        grid=grid,
        in_specs=[
            # Full length per row-chunk (block last dim == full array dim).
            pl.BlockSpec((tr, L), lambda i: (i, 0)),
        ],
        # Lane-dense output slab: full L_out per row-chunk.
        out_specs=pl.BlockSpec((tr, L_out), lambda i: (i, 0)),
        compiler_params=pltpu.CompilerParams(
            dimension_semantics=("parallel",),
            vmem_limit_bytes=32 * 1024 * 1024,
        ),
    )(x2)

    return out2.reshape(B, C, L_out)


if __name__ == "__main__":
    key = jax.random.PRNGKey(0)

    # Small shape consistent with a TCN-style forward: (batch, channels, length)
    B, C, L = 2, 4, 16
    chomp_size = 3
    x = jax.random.normal(key, (B, C, L), dtype=jnp.float32)

    out = chomp1d(x, chomp_size)
    out = jax.block_until_ready(out)

    ref = x[:, :, :-chomp_size]
    assert out.shape == (B, C, L - chomp_size)
    assert out.dtype == x.dtype
    assert jnp.array_equal(out, ref)

    # Second (still small) shape that exercises a multi-step parallel grid.
    key2 = jax.random.PRNGKey(1)
    B2, C2, L2 = 2, 64, 256
    chomp2 = 4
    x2 = jax.random.normal(key2, (B2, C2, L2), dtype=jnp.float32)
    out2 = jax.block_until_ready(chomp1d(x2, chomp2))
    assert jnp.array_equal(out2, x2[:, :, :-chomp2])

    print("KERNEL_OK")
</pallas_src>

<mosaic_0001>
module attributes {stable_mosaic.version = 11 : i64} {
  func.func @_chomp_kernel(%arg0: i32, %arg1: memref<8x16xf32, #tpu.memory_space<vmem>>, %arg2: memref<8x13xf32, #tpu.memory_space<vmem>>) attributes {dimension_semantics = [#tpu.dimension_semantics<parallel>], iteration_bounds = array<i64: 1>, scalar_prefetch = 0 : i64, scratch_operands = 0 : i64, tpu.core_type = #tpu.core_type<tc>, window_params = [{transform_indices = @transform_0, window_bounds = array<i64: 8, 16>}, {transform_indices = @transform_1, window_bounds = array<i64: 8, 13>}]} {
    %c0 = arith.constant 0 : index
    %c0_0 = arith.constant 0 : index
    %0 = vector.load %arg1[%c0, %c0_0] : memref<8x16xf32, #tpu.memory_space<vmem>>, vector<8x13xf32>
    %c0_1 = arith.constant 0 : index
    %c0_2 = arith.constant 0 : index
    %1 = vector.load %arg2[%c0_1, %c0_2] : memref<8x13xf32, #tpu.memory_space<vmem>>, vector<8x13xf32>
    tpu.vector_store %arg2[%c0_1, %c0_2], %0 {strides = array<i32>} : memref<8x13xf32, #tpu.memory_space<vmem>>, vector<8x13xf32>,
    return
  }
  func.func @transform_0(%arg0: i32) -> (i32, i32) {
    %c0_i32 = arith.constant 0 : i32
    %c0_i32_0 = arith.constant 0 : i32
    return %arg0, %c0_i32 : i32, i32
  }
  func.func @transform_1(%arg0: i32) -> (i32, i32) {
    %c0_i32 = arith.constant 0 : i32
    %c0_i32_0 = arith.constant 0 : i32
    return %arg0, %c0_i32 : i32, i32
  }
}

</mosaic_0001>

<llo_original>
// kernel: tpu_custom_call.1
$region0: #{tpu_custom_call.1}
  #allocation0 [shape = 'u32[]', space=smem, size = 0x4, offset = 0x4, fixed_abs, tag = 'smem constant byte address 0x4 - core index']
  #allocation1 [shape = 'u32[72,128]{1,0:T(1,128)}', space=vmem, size = 0x9000, scoped, tag = 'internal scratch']
  %s0 = inlined_call_operand.hbm [shape: f32[8,16], index: 0, kind: input, shape index: {}]
  %s1 = inlined_call_operand.hbm [shape: f32[8,13], index: 1, kind: output, shape index: {}]
  %s2 = sld [smem:[#allocation0]]
  $region18: #{tpu_custom_call.1} parent=0
    _
  %s4 = ssub.s32 1, %s2
  %s5 = scalar_select 0, %s4, %s2
  $region1: #{tpu_custom_call.1} parent=0
    #allocation2 [shape = 'u8[4096]{0}', space=vmem, size = 0x1000, scoped, tag = 'input window, operand 0, single buffered']
    #allocation3 [shape = 's32[1]{0}', space=sflag, size = 0x4, scoped, tag = 'scoped memory for tpu_custom_call.1']
    #allocation4 [shape = 's32[1]{0}', space=sflag, size = 0x4, scoped, tag = 'scoped memory for tpu_custom_call.1']
    #allocation5 [shape = 'u8[4096]{0}', space=vmem, size = 0x1000, scoped, tag = 'output window, operand 0, single buffered']
    %6 = vsyncpa [#allocation3], 0
    %7 = vsyncpa [#allocation4], 0
    // Predicated region
    $region2: #{tpu_custom_call.1} parent=1 // pred_check
      _
    $region3: #{tpu_custom_call.1} parent=1 // pred_check_branch
      %9 = sbr.rel (0) target = $region5
    $region4: #{tpu_custom_call.1} parent=1 // pred_region
      %11 = vsyncadd [#allocation3], 0
      %s13 = sshll.u32 %s0, 4
      %s14 = int_to_ptr.hbm [resolvable:$true] %s13
      %s15 = sshll.u32 [#allocation2], 4
      %s16 = int_to_ptr.vmem [resolvable:$true] %s15
      %18 = dma.hbm_to_vmem [thread:$0]  %s14, 128, %s16, [#allocation3]
    $region5: #{tpu_custom_call.1} parent=1 // pred_fallthru
      _
    // Predicated region
    $region6: #{tpu_custom_call.1} parent=1 // pred_check
      _
    $region7: #{tpu_custom_call.1} parent=1 // pred_check_branch
      %20 = sbr.rel (0) target = $region9
    $region8: #{tpu_custom_call.1} parent=1 // pred_region
      %22 = dma.done [#allocation3], 128
    $region9: #{tpu_custom_call.1} parent=1 // pred_fallthru
      _
    %v23 = vld [vmem:[#allocation2] sm:$0xff]
    %vm24 = vcmask 105472
    %25 = vst.msk [vmem:[#allocation5] sm:$0xff] %vm24, %v23
    // Predicated region
    $region10: #{tpu_custom_call.1} parent=1 // pred_check
      _
    $region11: #{tpu_custom_call.1} parent=1 // pred_check_branch
      %27 = sbr.rel (0) target = $region13
    $region12: #{tpu_custom_call.1} parent=1 // pred_region
      %29 = vsyncadd [#allocation4], 0
      %s31 = sshll.u32 [#allocation5], 4
      %s32 = int_to_ptr.vmem [resolvable:$true] %s31
      %s33 = sshll.u32 %s1, 4
      %s34 = int_to_ptr.hbm [resolvable:$true] %s33
      %36 = dma.vmem_to_hbm [thread:$0]  %s32, 128, %s34, [#allocation4]
    $region13: #{tpu_custom_call.1} parent=1 // pred_fallthru
      _
    // Predicated region
    $region14: #{tpu_custom_call.1} parent=1 // pred_check
      _
    $region15: #{tpu_custom_call.1} parent=1 // pred_check_branch
      %38 = sbr.rel (0) target = $region17
    $region16: #{tpu_custom_call.1} parent=1 // pred_region
      %40 = dma.done [#allocation4], 128
    $region17: #{tpu_custom_call.1} parent=1 // pred_fallthru
      _
    %41 = vsyncpa [#allocation3], 1
    %42 = vsyncpa [#allocation4], 1

</llo_original>
